<compile_context>
chip_gen: v7x
topology: tpu7x:2x2x1
jax: 0.10.0
libtpu: 0.0.40
codegen_flags: <defaults>
</compile_context>

<pallas_src>
import jax
import jax.numpy as jnp
from jax.experimental import pallas as pl
from jax.experimental.pallas import tpu as pltpu

INPUT_SIZE = 4
HID1 = 16
HID2 = 12
OUTPUT_SIZE = 3

_LANE = 128        # TPU lane width; batch tiles are multiples of this.
_MAX_TILE = 32768  # VMEM-safe tile cap on all generations (incl. v7x 64 MiB).


def _round_up(n, m):
    return ((n + m - 1) // m) * m


def _dense_vpu(w, b, x):
    """(out, K) @ (K, TB) + (out, 1) as unrolled rank-1 VPU updates.

    w: (out, K), b: (out, 1), x: (K, TB) -> (out, TB).  K is 4/16/12, so the
    Python loop fully unrolls at trace time; each term is a rank-1 update that
    lowers to dense per-lane multiply-adds (no MXU).  The k = 0 term is fused
    with the bias so no (out, TB) broadcast of b is materialized up front.
    """
    acc = w[:, 0:1] * x[0:1, :] + b          # implicit broadcasts -> (out, TB)
    for k in range(1, w.shape[1]):
        acc = acc + w[:, k:k + 1] * x[k:k + 1, :]
    return acc


def mlp_kernel(x_ref, w1_ref, b1_ref, w2_ref, b2_ref, w3_ref, b3_ref, o_ref):
    """Fused 3-layer MLP on one batch tile (batch on the lane axis)."""
    x = x_ref[...]                                                    # (4,  TB)
    h1 = jnp.maximum(_dense_vpu(w1_ref[...], b1_ref[...], x), 0.0)    # (16, TB)
    h2 = jnp.maximum(_dense_vpu(w2_ref[...], b2_ref[...], h1), 0.0)   # (12, TB)
    y = _dense_vpu(w3_ref[...], b3_ref[...], h2)                      # (3,  TB)
    o_ref[...] = y.astype(o_ref.dtype)


def _choose_tile(batch, batch_tile):
    """Batch tile: multiple of 128 lanes, VMEM-capped, and small enough that
    the grid has >= 2 steps whenever the batch allows it (v7x megacore)."""
    tb = min(_round_up(max(batch_tile, _LANE), _LANE), _MAX_TILE)
    tb = min(tb, _round_up(batch, _LANE))
    if batch > _LANE:
        tb = min(tb, _round_up(pl.cdiv(batch, 2), _LANE))
    return max(tb, _LANE)


def ann_two_hid_forward_fm(xt, params, *, batch_tile=16384):
    """Feature-major fast path: xt (4, B) f32 -> (3, B) f32.

    Zero wrapper-side passes (review item 3, option (a)): use this form if the
    surrounding model keeps activations feature-major end-to-end.
    """
    B = xt.shape[1]
    tb = _choose_tile(B, batch_tile)
    grid = (pl.cdiv(B, tb),)          # ragged last block allowed: Pallas masks
    const = lambda i: (0, 0)          # weights/biases: resident, DMA'd once

    cost = pl.CostEstimate(
        flops=584 * B,                # 2 * (4*16 + 16*12 + 12*3) MACs per row
        transcendentals=0,
        bytes_accessed=(INPUT_SIZE + OUTPUT_SIZE) * 4 * B + 1300,
    )

    return pl.pallas_call(
        mlp_kernel,
        out_shape=jax.ShapeDtypeStruct((OUTPUT_SIZE, B), jnp.float32),
        grid=grid,
        in_specs=[
            pl.BlockSpec((INPUT_SIZE, tb), lambda i: (0, i)),   # x batch tile
            pl.BlockSpec((HID1, INPUT_SIZE), const),            # w1 (16, 4)
            pl.BlockSpec((HID1, 1), const),                     # b1 (16, 1)
            pl.BlockSpec((HID2, HID1), const),                  # w2 (12, 16)
            pl.BlockSpec((HID2, 1), const),                     # b2 (12, 1)
            pl.BlockSpec((OUTPUT_SIZE, HID2), const),           # w3 (3, 12)
            pl.BlockSpec((OUTPUT_SIZE, 1), const),               # b3 (3, 1)
        ],
        out_specs=pl.BlockSpec((OUTPUT_SIZE, tb), lambda i: (0, i)),
        compiler_params=pltpu.CompilerParams(
            dimension_semantics=("parallel",),  # shard batch tiles across TCs
        ),
        cost_estimate=cost,
    )(
        xt,
        params["w1"], params["b1"],
        params["w2"], params["b2"],
        params["w3"], params["b3"],
    )


def ann_two_hid_forward(x, params, *, batch_tile=16384):
    """Drop-in AnnTwoHid.forward: x (B, 4) f32 -> (B, 3) f32."""
    xt = jnp.asarray(x, jnp.float32).T            # (4, B): batch on lanes
    yt = ann_two_hid_forward_fm(xt, params, batch_tile=batch_tile)
    return yt.T                                   # (B, 3)


def init_params(key):
    """nn.Linear-style U(-1/sqrt(fan_in), 1/sqrt(fan_in)) init.

    Weights in PyTorch (out_features, in_features) layout; biases as
    (out_features, 1) columns so they broadcast across the lane (batch) axis.
    """
    ks = jax.random.split(key, 6)

    def uniform(k, shape, fan_in):
        bound = 1.0 / jnp.sqrt(jnp.float32(fan_in))
        return jax.random.uniform(k, shape, jnp.float32, -bound, bound)

    return {
        "w1": uniform(ks[0], (HID1, INPUT_SIZE), INPUT_SIZE),
        "b1": uniform(ks[1], (HID1, 1), INPUT_SIZE),
        "w2": uniform(ks[2], (HID2, HID1), HID1),
        "b2": uniform(ks[3], (HID2, 1), HID1),
        "w3": uniform(ks[4], (OUTPUT_SIZE, HID2), HID2),
        "b3": uniform(ks[5], (OUTPUT_SIZE, 1), HID2),
    }


def reference_forward(x, params):
    """Plain-JAX reference for correctness check (x: (B, 4) -> (B, 3))."""
    h1 = jnp.maximum(x @ params["w1"].T + params["b1"].T, 0.0)
    h2 = jnp.maximum(h1 @ params["w2"].T + params["b2"].T, 0.0)
    return h2 @ params["w3"].T + params["b3"].T


if __name__ == "__main__":
    key = jax.random.PRNGKey(0)
    k_param, k_x = jax.random.split(key)

    params = init_params(k_param)
    B = 200  # not a multiple of 128: exercises the ragged last grid block
    x = jax.random.normal(k_x, (B, INPUT_SIZE), jnp.float32)

    # Drop-in (B,4)->(B,3) path: tile logic picks tb=128, grid=(2,) here, so
    # multi-step pipelining + the ragged last block are both exercised.
    y = ann_two_hid_forward(x, params)
    y = jax.block_until_ready(y)

    # Feature-major fast path (no wrapper transposes at all).
    yt = ann_two_hid_forward_fm(x.T, params)
    yt = jax.block_until_ready(yt)

    y_ref = reference_forward(x, params)
    assert y.shape == (B, OUTPUT_SIZE)
    assert jnp.allclose(y, y_ref, atol=1e-5, rtol=1e-5), float(jnp.max(jnp.abs(y - y_ref)))
    assert jnp.allclose(yt.T, y_ref, atol=1e-5, rtol=1e-5), float(jnp.max(jnp.abs(yt.T - y_ref)))

    print("KERNEL_OK")
</pallas_src>

<mosaic_0001>
module attributes {stable_mosaic.version = 11 : i64} {
  func.func @mlp_kernel(%arg0: i32, %arg1: memref<4x128xf32, #tpu.memory_space<vmem>>, %arg2: memref<16x4xf32, #tpu.memory_space<vmem>>, %arg3: memref<16x1xf32, #tpu.memory_space<vmem>>, %arg4: memref<12x16xf32, #tpu.memory_space<vmem>>, %arg5: memref<12x1xf32, #tpu.memory_space<vmem>>, %arg6: memref<3x12xf32, #tpu.memory_space<vmem>>, %arg7: memref<3x1xf32, #tpu.memory_space<vmem>>, %arg8: memref<3x128xf32, #tpu.memory_space<vmem>>) attributes {dimension_semantics = [#tpu.dimension_semantics<parallel>], iteration_bounds = array<i64: 2>, scalar_prefetch = 0 : i64, scratch_operands = 0 : i64, tpu.core_type = #tpu.core_type<tc>, window_params = [{transform_indices = @transform_0, window_bounds = array<i64: 4, 128>}, {pipeline_mode = #tpu.pipeline_mode<synchronous>, transform_indices = @transform_1, window_bounds = array<i64: 16, 4>}, {pipeline_mode = #tpu.pipeline_mode<synchronous>, transform_indices = @transform_2, window_bounds = array<i64: 16, 1>}, {pipeline_mode = #tpu.pipeline_mode<synchronous>, transform_indices = @transform_3, window_bounds = array<i64: 12, 16>}, {pipeline_mode = #tpu.pipeline_mode<synchronous>, transform_indices = @transform_4, window_bounds = array<i64: 12, 1>}, {pipeline_mode = #tpu.pipeline_mode<synchronous>, transform_indices = @transform_5, window_bounds = array<i64: 3, 12>}, {pipeline_mode = #tpu.pipeline_mode<synchronous>, transform_indices = @transform_6, window_bounds = array<i64: 3, 1>}, {transform_indices = @transform_7, window_bounds = array<i64: 3, 128>}]} {
    %c0 = arith.constant 0 : index
    %c0_0 = arith.constant 0 : index
    %0 = vector.load %arg1[%c0, %c0_0] : memref<4x128xf32, #tpu.memory_space<vmem>>, vector<4x128xf32>
    %c0_1 = arith.constant 0 : index
    %c0_2 = arith.constant 0 : index
    %1 = vector.load %arg2[%c0_1, %c0_2] : memref<16x4xf32, #tpu.memory_space<vmem>>, vector<16x4xf32>
    %c0_3 = arith.constant 0 : index
    %c0_4 = arith.constant 0 : index
    %2 = vector.load %arg3[%c0_3, %c0_4] : memref<16x1xf32, #tpu.memory_space<vmem>>, vector<16x1xf32>
    %3 = vector.extract_strided_slice %1 {offsets = [0, 0], sizes = [16, 1], strides = [1, 1]} : vector<16x4xf32> to vector<16x1xf32>
    %4 = vector.extract_strided_slice %0 {offsets = [0, 0], sizes = [1, 128], strides = [1, 1]} : vector<4x128xf32> to vector<1x128xf32>
    %5 = vector.broadcast %3 : vector<16x1xf32> to vector<16x128xf32>
    %6 = vector.broadcast %4 : vector<1x128xf32> to vector<16x128xf32>
    %7 = arith.mulf %5, %6 : vector<16x128xf32>
    %8 = vector.broadcast %2 : vector<16x1xf32> to vector<16x128xf32>
    %9 = arith.addf %7, %8 : vector<16x128xf32>
    %10 = vector.extract_strided_slice %1 {offsets = [0, 1], sizes = [16, 1], strides = [1, 1]} : vector<16x4xf32> to vector<16x1xf32>
    %11 = vector.extract_strided_slice %0 {offsets = [1, 0], sizes = [1, 128], strides = [1, 1]} : vector<4x128xf32> to vector<1x128xf32>
    %12 = vector.broadcast %10 : vector<16x1xf32> to vector<16x128xf32>
    %13 = vector.broadcast %11 : vector<1x128xf32> to vector<16x128xf32>
    %14 = arith.mulf %12, %13 : vector<16x128xf32>
    %15 = arith.addf %9, %14 : vector<16x128xf32>
    %16 = vector.extract_strided_slice %1 {offsets = [0, 2], sizes = [16, 1], strides = [1, 1]} : vector<16x4xf32> to vector<16x1xf32>
    %17 = vector.extract_strided_slice %0 {offsets = [2, 0], sizes = [1, 128], strides = [1, 1]} : vector<4x128xf32> to vector<1x128xf32>
    %18 = vector.broadcast %16 : vector<16x1xf32> to vector<16x128xf32>
    %19 = vector.broadcast %17 : vector<1x128xf32> to vector<16x128xf32>
    %20 = arith.mulf %18, %19 : vector<16x128xf32>
    %21 = arith.addf %15, %20 : vector<16x128xf32>
    %22 = vector.extract_strided_slice %1 {offsets = [0, 3], sizes = [16, 1], strides = [1, 1]} : vector<16x4xf32> to vector<16x1xf32>
    %23 = vector.extract_strided_slice %0 {offsets = [3, 0], sizes = [1, 128], strides = [1, 1]} : vector<4x128xf32> to vector<1x128xf32>
    %24 = vector.broadcast %22 : vector<16x1xf32> to vector<16x128xf32>
    %25 = vector.broadcast %23 : vector<1x128xf32> to vector<16x128xf32>
    %26 = arith.mulf %24, %25 : vector<16x128xf32>
    %27 = arith.addf %21, %26 : vector<16x128xf32>
    %cst = arith.constant 0.000000e+00 : f32
    %28 = vector.broadcast %cst : f32 to vector<16x128xf32>
    %29 = arith.maximumf %27, %28 : vector<16x128xf32>
    %c0_5 = arith.constant 0 : index
    %c0_6 = arith.constant 0 : index
    %30 = vector.load %arg4[%c0_5, %c0_6] : memref<12x16xf32, #tpu.memory_space<vmem>>, vector<12x16xf32>
    %c0_7 = arith.constant 0 : index
    %c0_8 = arith.constant 0 : index
    %31 = vector.load %arg5[%c0_7, %c0_8] : memref<12x1xf32, #tpu.memory_space<vmem>>, vector<12x1xf32>
    %32 = vector.extract_strided_slice %30 {offsets = [0, 0], sizes = [12, 1], strides = [1, 1]} : vector<12x16xf32> to vector<12x1xf32>
    %33 = vector.extract_strided_slice %29 {offsets = [0, 0], sizes = [1, 128], strides = [1, 1]} : vector<16x128xf32> to vector<1x128xf32>
    %34 = vector.broadcast %32 : vector<12x1xf32> to vector<12x128xf32>
    %35 = vector.broadcast %33 : vector<1x128xf32> to vector<12x128xf32>
    %36 = arith.mulf %34, %35 : vector<12x128xf32>
    %37 = vector.broadcast %31 : vector<12x1xf32> to vector<12x128xf32>
    %38 = arith.addf %36, %37 : vector<12x128xf32>
    %39 = vector.extract_strided_slice %30 {offsets = [0, 1], sizes = [12, 1], strides = [1, 1]} : vector<12x16xf32> to vector<12x1xf32>
    %40 = vector.extract_strided_slice %29 {offsets = [1, 0], sizes = [1, 128], strides = [1, 1]} : vector<16x128xf32> to vector<1x128xf32>
    %41 = vector.broadcast %39 : vector<12x1xf32> to vector<12x128xf32>
    %42 = vector.broadcast %40 : vector<1x128xf32> to vector<12x128xf32>
    %43 = arith.mulf %41, %42 : vector<12x128xf32>
    %44 = arith.addf %38, %43 : vector<12x128xf32>
    %45 = vector.extract_strided_slice %30 {offsets = [0, 2], sizes = [12, 1], strides = [1, 1]} : vector<12x16xf32> to vector<12x1xf32>
    %46 = vector.extract_strided_slice %29 {offsets = [2, 0], sizes = [1, 128], strides = [1, 1]} : vector<16x128xf32> to vector<1x128xf32>
    %47 = vector.broadcast %45 : vector<12x1xf32> to vector<12x128xf32>
    %48 = vector.broadcast %46 : vector<1x128xf32> to vector<12x128xf32>
    %49 = arith.mulf %47, %48 : vector<12x128xf32>
    %50 = arith.addf %44, %49 : vector<12x128xf32>
    %51 = vector.extract_strided_slice %30 {offsets = [0, 3], sizes = [12, 1], strides = [1, 1]} : vector<12x16xf32> to vector<12x1xf32>
    %52 = vector.extract_strided_slice %29 {offsets = [3, 0], sizes = [1, 128], strides = [1, 1]} : vector<16x128xf32> to vector<1x128xf32>
    %53 = vector.broadcast %51 : vector<12x1xf32> to vector<12x128xf32>
    %54 = vector.broadcast %52 : vector<1x128xf32> to vector<12x128xf32>
    %55 = arith.mulf %53, %54 : vector<12x128xf32>
    %56 = arith.addf %50, %55 : vector<12x128xf32>
    %57 = vector.extract_strided_slice %30 {offsets = [0, 4], sizes = [12, 1], strides = [1, 1]} : vector<12x16xf32> to vector<12x1xf32>
    %58 = vector.extract_strided_slice %29 {offsets = [4, 0], sizes = [1, 128], strides = [1, 1]} : vector<16x128xf32> to vector<1x128xf32>
    %59 = vector.broadcast %57 : vector<12x1xf32> to vector<12x128xf32>
    %60 = vector.broadcast %58 : vector<1x128xf32> to vector<12x128xf32>
    %61 = arith.mulf %59, %60 : vector<12x128xf32>
    %62 = arith.addf %56, %61 : vector<12x128xf32>
    %63 = vector.extract_strided_slice %30 {offsets = [0, 5], sizes = [12, 1], strides = [1, 1]} : vector<12x16xf32> to vector<12x1xf32>
    %64 = vector.extract_strided_slice %29 {offsets = [5, 0], sizes = [1, 128], strides = [1, 1]} : vector<16x128xf32> to vector<1x128xf32>
    %65 = vector.broadcast %63 : vector<12x1xf32> to vector<12x128xf32>
    %66 = vector.broadcast %64 : vector<1x128xf32> to vector<12x128xf32>
    %67 = arith.mulf %65, %66 : vector<12x128xf32>
    %68 = arith.addf %62, %67 : vector<12x128xf32>
    %69 = vector.extract_strided_slice %30 {offsets = [0, 6], sizes = [12, 1], strides = [1, 1]} : vector<12x16xf32> to vector<12x1xf32>
    %70 = vector.extract_strided_slice %29 {offsets = [6, 0], sizes = [1, 128], strides = [1, 1]} : vector<16x128xf32> to vector<1x128xf32>
    %71 = vector.broadcast %69 : vector<12x1xf32> to vector<12x128xf32>
    %72 = vector.broadcast %70 : vector<1x128xf32> to vector<12x128xf32>
    %73 = arith.mulf %71, %72 : vector<12x128xf32>
    %74 = arith.addf %68, %73 : vector<12x128xf32>
    %75 = vector.extract_strided_slice %30 {offsets = [0, 7], sizes = [12, 1], strides = [1, 1]} : vector<12x16xf32> to vector<12x1xf32>
    %76 = vector.extract_strided_slice %29 {offsets = [7, 0], sizes = [1, 128], strides = [1, 1]} : vector<16x128xf32> to vector<1x128xf32>
    %77 = vector.broadcast %75 : vector<12x1xf32> to vector<12x128xf32>
    %78 = vector.broadcast %76 : vector<1x128xf32> to vector<12x128xf32>
    %79 = arith.mulf %77, %78 : vector<12x128xf32>
    %80 = arith.addf %74, %79 : vector<12x128xf32>
    %81 = vector.extract_strided_slice %30 {offsets = [0, 8], sizes = [12, 1], strides = [1, 1]} : vector<12x16xf32> to vector<12x1xf32>
    %82 = vector.extract_strided_slice %29 {offsets = [8, 0], sizes = [1, 128], strides = [1, 1]} : vector<16x128xf32> to vector<1x128xf32>
    %83 = vector.broadcast %81 : vector<12x1xf32> to vector<12x128xf32>
    %84 = vector.broadcast %82 : vector<1x128xf32> to vector<12x128xf32>
    %85 = arith.mulf %83, %84 : vector<12x128xf32>
    %86 = arith.addf %80, %85 : vector<12x128xf32>
    %87 = vector.extract_strided_slice %30 {offsets = [0, 9], sizes = [12, 1], strides = [1, 1]} : vector<12x16xf32> to vector<12x1xf32>
    %88 = vector.extract_strided_slice %29 {offsets = [9, 0], sizes = [1, 128], strides = [1, 1]} : vector<16x128xf32> to vector<1x128xf32>
    %89 = vector.broadcast %87 : vector<12x1xf32> to vector<12x128xf32>
    %90 = vector.broadcast %88 : vector<1x128xf32> to vector<12x128xf32>
    %91 = arith.mulf %89, %90 : vector<12x128xf32>
    %92 = arith.addf %86, %91 : vector<12x128xf32>
    %93 = vector.extract_strided_slice %30 {offsets = [0, 10], sizes = [12, 1], strides = [1, 1]} : vector<12x16xf32> to vector<12x1xf32>
    %94 = vector.extract_strided_slice %29 {offsets = [10, 0], sizes = [1, 128], strides = [1, 1]} : vector<16x128xf32> to vector<1x128xf32>
    %95 = vector.broadcast %93 : vector<12x1xf32> to vector<12x128xf32>
    %96 = vector.broadcast %94 : vector<1x128xf32> to vector<12x128xf32>
    %97 = arith.mulf %95, %96 : vector<12x128xf32>
    %98 = arith.addf %92, %97 : vector<12x128xf32>
    %99 = vector.extract_strided_slice %30 {offsets = [0, 11], sizes = [12, 1], strides = [1, 1]} : vector<12x16xf32> to vector<12x1xf32>
    %100 = vector.extract_strided_slice %29 {offsets = [11, 0], sizes = [1, 128], strides = [1, 1]} : vector<16x128xf32> to vector<1x128xf32>
    %101 = vector.broadcast %99 : vector<12x1xf32> to vector<12x128xf32>
    %102 = vector.broadcast %100 : vector<1x128xf32> to vector<12x128xf32>
    %103 = arith.mulf %101, %102 : vector<12x128xf32>
    %104 = arith.addf %98, %103 : vector<12x128xf32>
    %105 = vector.extract_strided_slice %30 {offsets = [0, 12], sizes = [12, 1], strides = [1, 1]} : vector<12x16xf32> to vector<12x1xf32>
    %106 = vector.extract_strided_slice %29 {offsets = [12, 0], sizes = [1, 128], strides = [1, 1]} : vector<16x128xf32> to vector<1x128xf32>
    %107 = vector.broadcast %105 : vector<12x1xf32> to vector<12x128xf32>
    %108 = vector.broadcast %106 : vector<1x128xf32> to vector<12x128xf32>
    %109 = arith.mulf %107, %108 : vector<12x128xf32>
    %110 = arith.addf %104, %109 : vector<12x128xf32>
    %111 = vector.extract_strided_slice %30 {offsets = [0, 13], sizes = [12, 1], strides = [1, 1]} : vector<12x16xf32> to vector<12x1xf32>
    %112 = vector.extract_strided_slice %29 {offsets = [13, 0], sizes = [1, 128], strides = [1, 1]} : vector<16x128xf32> to vector<1x128xf32>
    %113 = vector.broadcast %111 : vector<12x1xf32> to vector<12x128xf32>
    %114 = vector.broadcast %112 : vector<1x128xf32> to vector<12x128xf32>
    %115 = arith.mulf %113, %114 : vector<12x128xf32>
    %116 = arith.addf %110, %115 : vector<12x128xf32>
    %117 = vector.extract_strided_slice %30 {offsets = [0, 14], sizes = [12, 1], strides = [1, 1]} : vector<12x16xf32> to vector<12x1xf32>
    %118 = vector.extract_strided_slice %29 {offsets = [14, 0], sizes = [1, 128], strides = [1, 1]} : vector<16x128xf32> to vector<1x128xf32>
    %119 = vector.broadcast %117 : vector<12x1xf32> to vector<12x128xf32>
    %120 = vector.broadcast %118 : vector<1x128xf32> to vector<12x128xf32>
    %121 = arith.mulf %119, %120 : vector<12x128xf32>
    %122 = arith.addf %116, %121 : vector<12x128xf32>
    %123 = vector.extract_strided_slice %30 {offsets = [0, 15], sizes = [12, 1], strides = [1, 1]} : vector<12x16xf32> to vector<12x1xf32>
    %124 = vector.extract_strided_slice %29 {offsets = [15, 0], sizes = [1, 128], strides = [1, 1]} : vector<16x128xf32> to vector<1x128xf32>
    %125 = vector.broadcast %123 : vector<12x1xf32> to vector<12x128xf32>
    %126 = vector.broadcast %124 : vector<1x128xf32> to vector<12x128xf32>
    %127 = arith.mulf %125, %126 : vector<12x128xf32>
    %128 = arith.addf %122, %127 : vector<12x128xf32>
    %cst_9 = arith.constant 0.000000e+00 : f32
    %129 = vector.broadcast %cst_9 : f32 to vector<12x128xf32>
    %130 = arith.maximumf %128, %129 : vector<12x128xf32>
    %c0_10 = arith.constant 0 : index
    %c0_11 = arith.constant 0 : index
    %131 = vector.load %arg6[%c0_10, %c0_11] : memref<3x12xf32, #tpu.memory_space<vmem>>, vector<3x12xf32>
    %c0_12 = arith.constant 0 : index
    %c0_13 = arith.constant 0 : index
    %132 = vector.load %arg7[%c0_12, %c0_13] : memref<3x1xf32, #tpu.memory_space<vmem>>, vector<3x1xf32>
    %133 = vector.extract_strided_slice %131 {offsets = [0, 0], sizes = [3, 1], strides = [1, 1]} : vector<3x12xf32> to vector<3x1xf32>
    %134 = vector.extract_strided_slice %130 {offsets = [0, 0], sizes = [1, 128], strides = [1, 1]} : vector<12x128xf32> to vector<1x128xf32>
    %135 = vector.broadcast %133 : vector<3x1xf32> to vector<3x128xf32>
    %136 = vector.broadcast %134 : vector<1x128xf32> to vector<3x128xf32>
    %137 = arith.mulf %135, %136 : vector<3x128xf32>
    %138 = vector.broadcast %132 : vector<3x1xf32> to vector<3x128xf32>
    %139 = arith.addf %137, %138 : vector<3x128xf32>
    %140 = vector.extract_strided_slice %131 {offsets = [0, 1], sizes = [3, 1], strides = [1, 1]} : vector<3x12xf32> to vector<3x1xf32>
    %141 = vector.extract_strided_slice %130 {offsets = [1, 0], sizes = [1, 128], strides = [1, 1]} : vector<12x128xf32> to vector<1x128xf32>
    %142 = vector.broadcast %140 : vector<3x1xf32> to vector<3x128xf32>
    %143 = vector.broadcast %141 : vector<1x128xf32> to vector<3x128xf32>
    %144 = arith.mulf %142, %143 : vector<3x128xf32>
    %145 = arith.addf %139, %144 : vector<3x128xf32>
    %146 = vector.extract_strided_slice %131 {offsets = [0, 2], sizes = [3, 1], strides = [1, 1]} : vector<3x12xf32> to vector<3x1xf32>
    %147 = vector.extract_strided_slice %130 {offsets = [2, 0], sizes = [1, 128], strides = [1, 1]} : vector<12x128xf32> to vector<1x128xf32>
    %148 = vector.broadcast %146 : vector<3x1xf32> to vector<3x128xf32>
    %149 = vector.broadcast %147 : vector<1x128xf32> to vector<3x128xf32>
    %150 = arith.mulf %148, %149 : vector<3x128xf32>
    %151 = arith.addf %145, %150 : vector<3x128xf32>
    %152 = vector.extract_strided_slice %131 {offsets = [0, 3], sizes = [3, 1], strides = [1, 1]} : vector<3x12xf32> to vector<3x1xf32>
    %153 = vector.extract_strided_slice %130 {offsets = [3, 0], sizes = [1, 128], strides = [1, 1]} : vector<12x128xf32> to vector<1x128xf32>
    %154 = vector.broadcast %152 : vector<3x1xf32> to vector<3x128xf32>
    %155 = vector.broadcast %153 : vector<1x128xf32> to vector<3x128xf32>
    %156 = arith.mulf %154, %155 : vector<3x128xf32>
    %157 = arith.addf %151, %156 : vector<3x128xf32>
    %158 = vector.extract_strided_slice %131 {offsets = [0, 4], sizes = [3, 1], strides = [1, 1]} : vector<3x12xf32> to vector<3x1xf32>
    %159 = vector.extract_strided_slice %130 {offsets = [4, 0], sizes = [1, 128], strides = [1, 1]} : vector<12x128xf32> to vector<1x128xf32>
    %160 = vector.broadcast %158 : vector<3x1xf32> to vector<3x128xf32>
    %161 = vector.broadcast %159 : vector<1x128xf32> to vector<3x128xf32>
    %162 = arith.mulf %160, %161 : vector<3x128xf32>
    %163 = arith.addf %157, %162 : vector<3x128xf32>
    %164 = vector.extract_strided_slice %131 {offsets = [0, 5], sizes = [3, 1], strides = [1, 1]} : vector<3x12xf32> to vector<3x1xf32>
    %165 = vector.extract_strided_slice %130 {offsets = [5, 0], sizes = [1, 128], strides = [1, 1]} : vector<12x128xf32> to vector<1x128xf32>
    %166 = vector.broadcast %164 : vector<3x1xf32> to vector<3x128xf32>
    %167 = vector.broadcast %165 : vector<1x128xf32> to vector<3x128xf32>
    %168 = arith.mulf %166, %167 : vector<3x128xf32>
    %169 = arith.addf %163, %168 : vector<3x128xf32>
    %170 = vector.extract_strided_slice %131 {offsets = [0, 6], sizes = [3, 1], strides = [1, 1]} : vector<3x12xf32> to vector<3x1xf32>
    %171 = vector.extract_strided_slice %130 {offsets = [6, 0], sizes = [1, 128], strides = [1, 1]} : vector<12x128xf32> to vector<1x128xf32>
    %172 = vector.broadcast %170 : vector<3x1xf32> to vector<3x128xf32>
    %173 = vector.broadcast %171 : vector<1x128xf32> to vector<3x128xf32>
    %174 = arith.mulf %172, %173 : vector<3x128xf32>
    %175 = arith.addf %169, %174 : vector<3x128xf32>
    %176 = vector.extract_strided_slice %131 {offsets = [0, 7], sizes = [3, 1], strides = [1, 1]} : vector<3x12xf32> to vector<3x1xf32>
    %177 = vector.extract_strided_slice %130 {offsets = [7, 0], sizes = [1, 128], strides = [1, 1]} : vector<12x128xf32> to vector<1x128xf32>
    %178 = vector.broadcast %176 : vector<3x1xf32> to vector<3x128xf32>
    %179 = vector.broadcast %177 : vector<1x128xf32> to vector<3x128xf32>
    %180 = arith.mulf %178, %179 : vector<3x128xf32>
    %181 = arith.addf %175, %180 : vector<3x128xf32>
    %182 = vector.extract_strided_slice %131 {offsets = [0, 8], sizes = [3, 1], strides = [1, 1]} : vector<3x12xf32> to vector<3x1xf32>
    %183 = vector.extract_strided_slice %130 {offsets = [8, 0], sizes = [1, 128], strides = [1, 1]} : vector<12x128xf32> to vector<1x128xf32>
    %184 = vector.broadcast %182 : vector<3x1xf32> to vector<3x128xf32>
    %185 = vector.broadcast %183 : vector<1x128xf32> to vector<3x128xf32>
    %186 = arith.mulf %184, %185 : vector<3x128xf32>
    %187 = arith.addf %181, %186 : vector<3x128xf32>
    %188 = vector.extract_strided_slice %131 {offsets = [0, 9], sizes = [3, 1], strides = [1, 1]} : vector<3x12xf32> to vector<3x1xf32>
    %189 = vector.extract_strided_slice %130 {offsets = [9, 0], sizes = [1, 128], strides = [1, 1]} : vector<12x128xf32> to vector<1x128xf32>
    %190 = vector.broadcast %188 : vector<3x1xf32> to vector<3x128xf32>
    %191 = vector.broadcast %189 : vector<1x128xf32> to vector<3x128xf32>
    %192 = arith.mulf %190, %191 : vector<3x128xf32>
    %193 = arith.addf %187, %192 : vector<3x128xf32>
    %194 = vector.extract_strided_slice %131 {offsets = [0, 10], sizes = [3, 1], strides = [1, 1]} : vector<3x12xf32> to vector<3x1xf32>
    %195 = vector.extract_strided_slice %130 {offsets = [10, 0], sizes = [1, 128], strides = [1, 1]} : vector<12x128xf32> to vector<1x128xf32>
    %196 = vector.broadcast %194 : vector<3x1xf32> to vector<3x128xf32>
    %197 = vector.broadcast %195 : vector<1x128xf32> to vector<3x128xf32>
    %198 = arith.mulf %196, %197 : vector<3x128xf32>
    %199 = arith.addf %193, %198 : vector<3x128xf32>
    %200 = vector.extract_strided_slice %131 {offsets = [0, 11], sizes = [3, 1], strides = [1, 1]} : vector<3x12xf32> to vector<3x1xf32>
    %201 = vector.extract_strided_slice %130 {offsets = [11, 0], sizes = [1, 128], strides = [1, 1]} : vector<12x128xf32> to vector<1x128xf32>
    %202 = vector.broadcast %200 : vector<3x1xf32> to vector<3x128xf32>
    %203 = vector.broadcast %201 : vector<1x128xf32> to vector<3x128xf32>
    %204 = arith.mulf %202, %203 : vector<3x128xf32>
    %205 = arith.addf %199, %204 : vector<3x128xf32>
    %c0_14 = arith.constant 0 : index
    %c0_15 = arith.constant 0 : index
    %206 = vector.load %arg8[%c0_14, %c0_15] : memref<3x128xf32, #tpu.memory_space<vmem>>, vector<3x128xf32>
    tpu.vector_store %arg8[%c0_14, %c0_15], %205 {strides = array<i32>} : memref<3x128xf32, #tpu.memory_space<vmem>>, vector<3x128xf32>,
    return
  }
  func.func @transform_0(%arg0: i32) -> (i32, i32) {
    %c0_i32 = arith.constant 0 : i32
    %c0_i32_0 = arith.constant 0 : i32
    return %c0_i32, %arg0 : i32, i32
  }
  func.func @transform_1(%arg0: i32) -> (i32, i32) {
    %c0_i32 = arith.constant 0 : i32
    %c0_i32_0 = arith.constant 0 : i32
    %c0_i32_1 = arith.constant 0 : i32
    return %c0_i32, %c0_i32_0 : i32, i32
  }
  func.func @transform_2(%arg0: i32) -> (i32, i32) {
    %c0_i32 = arith.constant 0 : i32
    %c0_i32_0 = arith.constant 0 : i32
    %c0_i32_1 = arith.constant 0 : i32
    return %c0_i32, %c0_i32_0 : i32, i32
  }
  func.func @transform_3(%arg0: i32) -> (i32, i32) {
    %c0_i32 = arith.constant 0 : i32
    %c0_i32_0 = arith.constant 0 : i32
    %c0_i32_1 = arith.constant 0 : i32
    return %c0_i32, %c0_i32_0 : i32, i32
  }
  func.func @transform_4(%arg0: i32) -> (i32, i32) {
    %c0_i32 = arith.constant 0 : i32
    %c0_i32_0 = arith.constant 0 : i32
    %c0_i32_1 = arith.constant 0 : i32
    return %c0_i32, %c0_i32_0 : i32, i32
  }
  func.func @transform_5(%arg0: i32) -> (i32, i32) {
    %c0_i32 = arith.constant 0 : i32
    %c0_i32_0 = arith.constant 0 : i32
    %c0_i32_1 = arith.constant 0 : i32
    return %c0_i32, %c0_i32_0 : i32, i32
  }
  func.func @transform_6(%arg0: i32) -> (i32, i32) {
    %c0_i32 = arith.constant 0 : i32
    %c0_i32_0 = arith.constant 0 : i32
    %c0_i32_1 = arith.constant 0 : i32
    return %c0_i32, %c0_i32_0 : i32, i32
  }
  func.func @transform_7(%arg0: i32) -> (i32, i32) {
    %c0_i32 = arith.constant 0 : i32
    %c0_i32_0 = arith.constant 0 : i32
    return %c0_i32, %arg0 : i32, i32
  }
}

</mosaic_0001>

<llo_original>
// kernel: tpu_custom_call.1
$region0: #{tpu_custom_call.1}
  #allocation0 [shape = 'u32[]', space=smem, size = 0x4, offset = 0x4, fixed_abs, tag = 'smem constant byte address 0x4 - core index']
  #allocation1 [shape = 'u32[144,128]{1,0:T(1,128)}', space=vmem, size = 0x12000, scoped, tag = 'internal scratch']
  %s0 = inlined_call_operand.vmem [shape: f32[4,200], index: 0, kind: input, shape index: {}]
  %s1 = inlined_call_operand.vmem [shape: f32[16,4], index: 1, kind: input, shape index: {}]
  %s2 = inlined_call_operand.vmem [shape: f32[16,1], index: 2, kind: input, shape index: {}]
  %s3 = inlined_call_operand.vmem [shape: f32[12,16], index: 3, kind: input, shape index: {}]
  %s4 = inlined_call_operand.vmem [shape: f32[12,1], index: 4, kind: input, shape index: {}]
  %s5 = inlined_call_operand.vmem [shape: f32[3,12], index: 5, kind: input, shape index: {}]
  %s6 = inlined_call_operand.vmem [shape: f32[3,1], index: 6, kind: input, shape index: {}]
  %s7 = inlined_call_operand.hbm [shape: f32[3,200], index: 7, kind: output, shape index: {}]
  %s8 = sld [smem:[#allocation0]]
  $region61: #{tpu_custom_call.1} parent=0
    _
  %s10 = ssub.s32 1, %s8
  %s11 = scalar_select 0, %s10, %s8
  $region1: #{tpu_custom_call.1} parent=0
    #allocation2 [shape = 'u8[4096]{0}', space=vmem, size = 0x1000, scoped, tag = 'output window, operand 0']
    #allocation3 [shape = 's32[2]{0}', space=sflag, size = 0x8, scoped, tag = 'scoped memory for tpu_custom_call.1']
    %12 = vsyncpa [#allocation3], 0
    %s13 = scalar_lea.sflag [#allocation3], 1
    %14 = vsyncpa %s13, 0
    loop: start=0, step=1, limit=4
    $region2: #{tpu_custom_call.1} parent=1 // loop_pre_header
      _
    $region3: #{tpu_custom_call.1} parent=1 // loop_header
      %s16 = sphi 0, %s20
      %p17 = scmp.ge.s32.totalorder %s16, 4
      %s26 = sphi 0, %s28
      %s29 = sphi 0, %s26
      %s30 = sphi 0, %s29
      %s46 = sphi 0, %s30
      %s50 = sphi 0, %s50
      %s52 = sphi 0, %s50
      %s53 = sphi 0, %s52
      %s67 = sphi 0, %s53
      %s71 = sphi 0, %s71
      %s73 = sphi 0, %s71
      %s74 = sphi 0, %s73
      %s88 = sphi 0, %s74
      %s92 = sphi 0, %s92
      %s94 = sphi 0, %s92
      %s95 = sphi 0, %s94
      %s109 = sphi 0, %s95
      %s113 = sphi 0, %s113
      %s115 = sphi 0, %s113
      %s116 = sphi 0, %s115
      %s130 = sphi 0, %s116
      %s134 = sphi 0, %s134
      %s136 = sphi 0, %s134
      %s137 = sphi 0, %s136
      %s151 = sphi 0, %s137
      %s155 = sphi 0, %s155
      %s157 = sphi 0, %s155
      %s158 = sphi 0, %s157
      %s172 = sphi 0, %s158
      %s178 = sphi 0, %s180
      %s181 = sphi 0, %s178
      %s182 = sphi 0, %s181
      %s198 = sphi 0, %s182
    $region4: #{tpu_custom_call.1} parent=1 // loop_header_branch
      %19 = sbr.rel (%p17) target = $region8
    $region5: #{tpu_custom_call.1} parent=1 // loop_body
      %s21 = ssub.s32 %s16, 1
      %s22 = ssub.s32 %s16, 2
      %s23 = sadd.s32 %s16, 1
      %s24 = ssub.s32 %s16, %s23
      %p25 = scmp.eq.s32.totalorder %s24, 0
      %s27 = sadd.s32 %s26, 1
      %s28 = scalar_select %p25, %s26, %s27
      %p31 = pneg %p25
      %p32 = scmp.eq.s32.totalorder %s16, 1
      %p33 = por %p31, %p32
      %p34 = scmp.ne.s32.totalorder %s26, %s29
      %p35 = scmp.eq.s32.totalorder %s16, 0
      %p36 = por %p34, %p35
      %p37 = scmp.ne.s32.totalorder %s26, %s29
      %p38 = scmp.eq.s32.totalorder %s21, 1
      %p39 = por %p37, %p38
      %p40 = scmp.ne.s32.totalorder %s29, %s30
      %p41 = scmp.eq.s32.totalorder %s21, 0
      %p42 = por %p40, %p41
      %p43 = scmp.ne.s32.totalorder %s29, %s30
      %p44 = scmp.eq.s32.totalorder %s22, 1
      %p45 = por %p43, %p44
      %p47 = scmp.ne.s32.totalorder %s30, %s46
      %p48 = scmp.eq.s32.totalorder %s22, 0
      %p49 = por %p47, %p48
      %s51 = sadd.s32 %s50, 1
      %p54 = scmp.eq.s32.totalorder %s16, 1
      %p55 = scmp.ne.s32.totalorder %s50, %s52
      %p56 = scmp.eq.s32.totalorder %s16, 0
      %p57 = por %p55, %p56
      %p58 = scmp.ne.s32.totalorder %s50, %s52
      %p59 = scmp.eq.s32.totalorder %s21, 1
      %p60 = por %p58, %p59
      %p61 = scmp.ne.s32.totalorder %s52, %s53
      %p62 = scmp.eq.s32.totalorder %s21, 0
      %p63 = por %p61, %p62
      %p64 = scmp.ne.s32.totalorder %s52, %s53
      %p65 = scmp.eq.s32.totalorder %s22, 1
      %p66 = por %p64, %p65
      %p68 = scmp.ne.s32.totalorder %s53, %s67
      %p69 = scmp.eq.s32.totalorder %s22, 0
      %p70 = por %p68, %p69
      %s72 = sadd.s32 %s71, 1
      %p75 = scmp.eq.s32.totalorder %s16, 1
      %p76 = scmp.ne.s32.totalorder %s71, %s73
      %p77 = scmp.eq.s32.totalorder %s16, 0
      %p78 = por %p76, %p77
      %p79 = scmp.ne.s32.totalorder %s71, %s73
      %p80 = scmp.eq.s32.totalorder %s21, 1
      %p81 = por %p79, %p80
      %p82 = scmp.ne.s32.totalorder %s73, %s74
      %p83 = scmp.eq.s32.totalorder %s21, 0
      %p84 = por %p82, %p83
      %p85 = scmp.ne.s32.totalorder %s73, %s74
      %p86 = scmp.eq.s32.totalorder %s22, 1
      %p87 = por %p85, %p86
      %p89 = scmp.ne.s32.totalorder %s74, %s88
      %p90 = scmp.eq.s32.totalorder %s22, 0
      %p91 = por %p89, %p90
      %s93 = sadd.s32 %s92, 1
      %p96 = scmp.eq.s32.totalorder %s16, 1
      %p97 = scmp.ne.s32.totalorder %s92, %s94
      %p98 = scmp.eq.s32.totalorder %s16, 0
      %p99 = por %p97, %p98
      %p100 = scmp.ne.s32.totalorder %s92, %s94
      %p101 = scmp.eq.s32.totalorder %s21, 1
      %p102 = por %p100, %p101
      %p103 = scmp.ne.s32.totalorder %s94, %s95
      %p104 = scmp.eq.s32.totalorder %s21, 0
      %p105 = por %p103, %p104
      %p106 = scmp.ne.s32.totalorder %s94, %s95
      %p107 = scmp.eq.s32.totalorder %s22, 1
      %p108 = por %p106, %p107
      %p110 = scmp.ne.s32.totalorder %s95, %s109
      %p111 = scmp.eq.s32.totalorder %s22, 0
      %p112 = por %p110, %p111
      %s114 = sadd.s32 %s113, 1
      %p117 = scmp.eq.s32.totalorder %s16, 1
      %p118 = scmp.ne.s32.totalorder %s113, %s115
      %p119 = scmp.eq.s32.totalorder %s16, 0
      %p120 = por %p118, %p119
      %p121 = scmp.ne.s32.totalorder %s113, %s115
      %p122 = scmp.eq.s32.totalorder %s21, 1
      %p123 = por %p121, %p122
      %p124 = scmp.ne.s32.totalorder %s115, %s116
      %p125 = scmp.eq.s32.totalorder %s21, 0
      %p126 = por %p124, %p125
      %p127 = scmp.ne.s32.totalorder %s115, %s116
      %p128 = scmp.eq.s32.totalorder %s22, 1
      %p129 = por %p127, %p128
      %p131 = scmp.ne.s32.totalorder %s116, %s130
      %p132 = scmp.eq.s32.totalorder %s22, 0
      %p133 = por %p131, %p132
      %s135 = sadd.s32 %s134, 1
      %p138 = scmp.eq.s32.totalorder %s16, 1
      %p139 = scmp.ne.s32.totalorder %s134, %s136
      %p140 = scmp.eq.s32.totalorder %s16, 0
      %p141 = por %p139, %p140
      %p142 = scmp.ne.s32.totalorder %s134, %s136
      %p143 = scmp.eq.s32.totalorder %s21, 1
      %p144 = por %p142, %p143
      %p145 = scmp.ne.s32.totalorder %s136, %s137
      %p146 = scmp.eq.s32.totalorder %s21, 0
      %p147 = por %p145, %p146
      %p148 = scmp.ne.s32.totalorder %s136, %s137
      %p149 = scmp.eq.s32.totalorder %s22, 1
      %p150 = por %p148, %p149
      %p152 = scmp.ne.s32.totalorder %s137, %s151
      %p153 = scmp.eq.s32.totalorder %s22, 0
      %p154 = por %p152, %p153
      %s156 = sadd.s32 %s155, 1
      %p159 = scmp.eq.s32.totalorder %s16, 1
      %p160 = scmp.ne.s32.totalorder %s155, %s157
      %p161 = scmp.eq.s32.totalorder %s16, 0
      %p162 = por %p160, %p161
      %p163 = scmp.ne.s32.totalorder %s155, %s157
      %p164 = scmp.eq.s32.totalorder %s21, 1
      %p165 = por %p163, %p164
      %p166 = scmp.ne.s32.totalorder %s157, %s158
      %p167 = scmp.eq.s32.totalorder %s21, 0
      %p168 = por %p166, %p167
      %p169 = scmp.ne.s32.totalorder %s157, %s158
      %p170 = scmp.eq.s32.totalorder %s22, 1
      %p171 = por %p169, %p170
      %p173 = scmp.ne.s32.totalorder %s158, %s172
      %p174 = scmp.eq.s32.totalorder %s22, 0
      %p175 = por %p173, %p174
      %s176 = ssub.s32 %s16, %s23
      %p177 = scmp.eq.s32.totalorder %s176, 0
      %s179 = sadd.s32 %s178, 1
      %s180 = scalar_select %p177, %s178, %s179
      %p183 = pneg %p177
      %p184 = scmp.eq.s32.totalorder %s16, 1
      %p185 = por %p183, %p184
      %p186 = scmp.ne.s32.totalorder %s178, %s181
      %p187 = scmp.eq.s32.totalorder %s16, 0
      %p188 = por %p186, %p187
      %p189 = scmp.ne.s32.totalorder %s178, %s181
      %p190 = scmp.eq.s32.totalorder %s21, 1
      %p191 = por %p189, %p190
      %p192 = scmp.ne.s32.totalorder %s181, %s182
      %p193 = scmp.eq.s32.totalorder %s21, 0
      %p194 = por %p192, %p193
      %p195 = scmp.ne.s32.totalorder %s181, %s182
      %p196 = scmp.eq.s32.totalorder %s22, 1
      %p197 = por %p195, %p196
      %p199 = scmp.ne.s32.totalorder %s182, %s198
      %p200 = scmp.eq.s32.totalorder %s22, 0
      %p201 = por %p199, %p200
      %p202 = scmp.le.s32.totalorder 1, %s16
      %p203 = scmp.lt.s32.totalorder %s16, 3
      %p204 = pnand %p202, %p203
      %p205 = pneg %p204
      // Predicated region
      $region9: #{tpu_custom_call.1} parent=5 // pred_check
        _
      $region10: #{tpu_custom_call.1} parent=5 // pred_check_branch
        %207 = sbr.rel (%p204) target = $region12
      $region11: #{tpu_custom_call.1} parent=5 // pred_region
        %s208 = ssub.s32 %s16, 1
        // Predicated region
        $region13: #{tpu_custom_call.1} parent=11 // pred_check
          %p209 = pneg %p63
        $region14: #{tpu_custom_call.1} parent=11 // pred_check_branch
          %211 = sbr.rel (%p209) target = $region16
        $region15: #{tpu_custom_call.1} parent=11 // pred_region
          _
        $region16: #{tpu_custom_call.1} parent=11 // pred_fallthru
          _
        // Predicated region
        $region17: #{tpu_custom_call.1} parent=11 // pred_check
          %p212 = pneg %p84
        $region18: #{tpu_custom_call.1} parent=11 // pred_check_branch
          %214 = sbr.rel (%p212) target = $region20
        $region19: #{tpu_custom_call.1} parent=11 // pred_region
          _
        $region20: #{tpu_custom_call.1} parent=11 // pred_fallthru
          _
        // Predicated region
        $region21: #{tpu_custom_call.1} parent=11 // pred_check
          %p215 = pneg %p105
        $region22: #{tpu_custom_call.1} parent=11 // pred_check_branch
          %217 = sbr.rel (%p215) target = $region24
        $region23: #{tpu_custom_call.1} parent=11 // pred_region
          _
        $region24: #{tpu_custom_call.1} parent=11 // pred_fallthru
          _
        // Predicated region
        $region25: #{tpu_custom_call.1} parent=11 // pred_check
          %p218 = pneg %p126
        $region26: #{tpu_custom_call.1} parent=11 // pred_check_branch
          %220 = sbr.rel (%p218) target = $region28
        $region27: #{tpu_custom_call.1} parent=11 // pred_region
          _
        $region28: #{tpu_custom_call.1} parent=11 // pred_fallthru
          _
        // Predicated region
        $region29: #{tpu_custom_call.1} parent=11 // pred_check
          %p221 = pneg %p147
        $region30: #{tpu_custom_call.1} parent=11 // pred_check_branch
          %223 = sbr.rel (%p221) target = $region32
        $region31: #{tpu_custom_call.1} parent=11 // pred_region
          _
        $region32: #{tpu_custom_call.1} parent=11 // pred_fallthru
          _
        // Predicated region
        $region33: #{tpu_custom_call.1} parent=11 // pred_check
          %p224 = pneg %p168
        $region34: #{tpu_custom_call.1} parent=11 // pred_check_branch
          %226 = sbr.rel (%p224) target = $region36
        $region35: #{tpu_custom_call.1} parent=11 // pred_region
          _
        $region36: #{tpu_custom_call.1} parent=11 // pred_fallthru
          _
      $region12: #{tpu_custom_call.1} parent=5 // pred_fallthru
        _
      %p227 = scmp.lt.s32.totalorder %s16, 2
      // Predicated region
      $region37: #{tpu_custom_call.1} parent=5 // pred_check
        %p228 = pneg %p227
      $region38: #{tpu_custom_call.1} parent=5 // pred_check_branch
        %230 = sbr.rel (%p228) target = $region40
      $region39: #{tpu_custom_call.1} parent=5 // pred_region
        // Predicated region
        $region41: #{tpu_custom_call.1} parent=39 // pred_check
          %p231 = pneg %p36
        $region42: #{tpu_custom_call.1} parent=39 // pred_check_branch
          %233 = sbr.rel (%p231) target = $region44
        $region43: #{tpu_custom_call.1} parent=39 // pred_region
          %p234 = scmp.lt.s32.totalorder %s16, 1
          %s235 = scalar_select %p234, %s16, 1
          %s236 = smul.addr %s235, 4
          %s237 = scalar_lea.vmem %s0, %s236
        $region44: #{tpu_custom_call.1} parent=39 // pred_fallthru
          _
      $region40: #{tpu_custom_call.1} parent=5 // pred_fallthru
        _
      %p238 = scmp.le.s32.totalorder 1, %s16
      %p239 = scmp.lt.s32.totalorder %s16, 3
      %p240 = pnand %p238, %p239
      %p241 = pneg %p240
      // Predicated region
      $region45: #{tpu_custom_call.1} parent=5 // pred_check
        _
      $region46: #{tpu_custom_call.1} parent=5 // pred_check_branch
        %243 = sbr.rel (%p240) target = $region48
      $region47: #{tpu_custom_call.1} parent=5 // pred_region
        %s244 = ssub.s32 %s16, 1
        %p245 = scmp.lt.s32.totalorder %s21, 1
        %s246 = scalar_select %p245, %s21, 1
        %s247 = smul.addr %s246, 4
        %s248 = scalar_lea.vmem %s0, %s247
        %p249 = pneg %p42
        %p250 = pneg %p39
        %p251 = pneg %p63
        %p252 = pneg %p60
        %p253 = pneg %p84
        %p254 = pneg %p81
        %p255 = pneg %p105
        %p256 = pneg %p102
        %p257 = pneg %p126
        %p258 = pneg %p123
        %p259 = pneg %p147
        %p260 = pneg %p144
        %p261 = pneg %p168
        %p262 = pneg %p165
        %p263 = pneg %p194
        %p264 = pneg %p191
        %s265 = sand.u32 %s181, 1
        %s266 = scalar_lea.sflag [#allocation3], %s265
        %s267 = sand.u32 %s181, 1
        %s268 = smul.addr %s267, 4
        %s269 = scalar_lea.vmem [#allocation2], %s268
        %p270 = scmp.lt.s32.totalorder %s21, 1
        %s271 = scalar_select %p270, %s21, 1
        %s272 = smul.addr %s271, 4
        %s273 = scalar_lea.vmem %s0, %s272
        %v274 = vld [vmem:[%s273] sm:$0xf]
        %v275 = vld [vmem:[%s1] sm:$0xff]
        %v276 = vld [vmem:[%s1 + $0x8] sm:$0xff]
        %v277 = vld [vmem:[%s2] sm:$0xff]
        %v278 = vld [vmem:[%s2 + $0x8] sm:$0xff]
        %280 = vset.pattern.permute.xlu0 0
        %281 = vperm.xlu0 %280, %v275
        %v282 = vpop.permute.xlu0 %281
        %285 = vset.pattern.permute.xlu0 0
        %286 = vperm.xlu0 %285, %v276
        %v287 = vpop.permute.xlu0 %286
        %v289 = vlaneseq
        %v290 = vshrl.u32 %v289, 7
        %v291 = vsub.s32 0, %v290
        %v292 = vrot.slane %v274, %v291
        %v293 = vmul.f32 %v282, %v292
        %v294 = vmul.f32 %v287, %v292
        %296 = vset.pattern.permute.xlu0 0
        %297 = vperm.xlu0 %296, %v277
        %v298 = vpop.permute.xlu0 %297
        %301 = vset.pattern.permute.xlu0 0
        %302 = vperm.xlu0 %301, %v278
        %v303 = vpop.permute.xlu0 %302
        %v305 = vadd.f32 %v293, %v298
        %v306 = vadd.f32 %v294, %v303
        %307 = vset.pattern.permute.xlu0 1
        %308 = vperm.xlu0 %307, %v275
        %v309 = vpop.permute.xlu0 %308
        %311 = vset.pattern.permute.xlu0 1
        %312 = vperm.xlu0 %311, %v276
        %v313 = vpop.permute.xlu0 %312
        %v315 = vlaneseq
        %v316 = vshrl.u32 %v315, 7
        %v317 = vsub.s32 1, %v316
        %v318 = vrot.slane %v274, %v317
        %v319 = vmul.f32 %v309, %v318
        %v320 = vmul.f32 %v313, %v318
        %v321 = vadd.f32 %v305, %v319
        %v322 = vadd.f32 %v306, %v320
        %323 = vset.pattern.permute.xlu0 2
        %324 = vperm.xlu0 %323, %v275
        %v325 = vpop.permute.xlu0 %324
        %327 = vset.pattern.permute.xlu0 2
        %328 = vperm.xlu0 %327, %v276
        %v329 = vpop.permute.xlu0 %328
        %v331 = vlaneseq
        %v332 = vshrl.u32 %v331, 7
        %v333 = vsub.s32 2, %v332
        %v334 = vrot.slane %v274, %v333
        %v335 = vmul.f32 %v325, %v334
        %v336 = vmul.f32 %v329, %v334
        %v337 = vadd.f32 %v321, %v335
        %v338 = vadd.f32 %v322, %v336
        %339 = vset.pattern.permute.xlu0 3
        %340 = vperm.xlu0 %339, %v275
        %v341 = vpop.permute.xlu0 %340
        %343 = vset.pattern.permute.xlu0 3
        %344 = vperm.xlu0 %343, %v276
        %v345 = vpop.permute.xlu0 %344
        %v347 = vlaneseq
        %v348 = vshrl.u32 %v347, 7
        %v349 = vsub.s32 3, %v348
        %v350 = vrot.slane %v274, %v349
        %v351 = vmul.f32 %v341, %v350
        %v352 = vmul.f32 %v345, %v350
        %v353 = vadd.f32 %v337, %v351
        %v354 = vadd.f32 %v338, %v352
        %v355 = vmax.f32 %v353, 0.0
        %v356 = vmax.f32 %v354, 0.0
        %v357 = vld [vmem:[%s3] sm:$0xff]
        %v358 = vld [vmem:[%s3 + $0x8] sm:$0xf]
        %v359 = vld [vmem:[%s4] sm:$0xff]
        %v360 = vld [vmem:[%s4 + $0x8] sm:$0xf]
        %362 = vset.pattern.permute.xlu0 0
        %363 = vperm.xlu0 %362, %v357
        %v364 = vpop.permute.xlu0 %363
        %367 = vset.pattern.permute.xlu0 0
        %368 = vperm.xlu0 %367, %v358
        %v369 = vpop.permute.xlu0 %368
        %v371 = vlaneseq
        %v372 = vshrl.u32 %v371, 7
        %v373 = vsub.s32 0, %v372
        %v374 = vrot.slane %v355, %v373
        %v375 = vmul.f32 %v364, %v374
        %v376 = vmul.f32 %v369, %v374
        %378 = vset.pattern.permute.xlu0 0
        %379 = vperm.xlu0 %378, %v359
        %v380 = vpop.permute.xlu0 %379
        %383 = vset.pattern.permute.xlu0 0
        %384 = vperm.xlu0 %383, %v360
        %v385 = vpop.permute.xlu0 %384
        %v387 = vadd.f32 %v375, %v380
        %v388 = vadd.f32 %v376, %v385
        %389 = vset.pattern.permute.xlu0 1
        %390 = vperm.xlu0 %389, %v357
        %v391 = vpop.permute.xlu0 %390
        %393 = vset.pattern.permute.xlu0 1
        %394 = vperm.xlu0 %393, %v358
        %v395 = vpop.permute.xlu0 %394
        %v397 = vlaneseq
        %v398 = vshrl.u32 %v397, 7
        %v399 = vsub.s32 1, %v398
        %v400 = vrot.slane %v355, %v399
        %v401 = vmul.f32 %v391, %v400
        %v402 = vmul.f32 %v395, %v400
        %v403 = vadd.f32 %v387, %v401
        %v404 = vadd.f32 %v388, %v402
        %405 = vset.pattern.permute.xlu0 2
        %406 = vperm.xlu0 %405, %v357
        %v407 = vpop.permute.xlu0 %406
        %409 = vset.pattern.permute.xlu0 2
        %410 = vperm.xlu0 %409, %v358
        %v411 = vpop.permute.xlu0 %410
        %v413 = vlaneseq
        %v414 = vshrl.u32 %v413, 7
        %v415 = vsub.s32 2, %v414
        %v416 = vrot.slane %v355, %v415
        %v417 = vmul.f32 %v407, %v416
        %v418 = vmul.f32 %v411, %v416
        %v419 = vadd.f32 %v403, %v417
        %v420 = vadd.f32 %v404, %v418
        %421 = vset.pattern.permute.xlu0 3
        %422 = vperm.xlu0 %421, %v357
        %v423 = vpop.permute.xlu0 %422
        %425 = vset.pattern.permute.xlu0 3
        %426 = vperm.xlu0 %425, %v358
        %v427 = vpop.permute.xlu0 %426
        %v429 = vlaneseq
        %v430 = vshrl.u32 %v429, 7
        %v431 = vsub.s32 3, %v430
        %v432 = vrot.slane %v355, %v431
        %v433 = vmul.f32 %v423, %v432
        %v434 = vmul.f32 %v427, %v432
        %v435 = vadd.f32 %v419, %v433
        %v436 = vadd.f32 %v420, %v434
        %437 = vset.pattern.permute.xlu0 4
        %438 = vperm.xlu0 %437, %v357
        %v439 = vpop.permute.xlu0 %438
        %441 = vset.pattern.permute.xlu0 4
        %442 = vperm.xlu0 %441, %v358
        %v443 = vpop.permute.xlu0 %442
        %v445 = vlaneseq
        %v446 = vshrl.u32 %v445, 7
        %v447 = vsub.s32 4, %v446
        %v448 = vrot.slane %v355, %v447
        %v449 = vmul.f32 %v439, %v448
        %v450 = vmul.f32 %v443, %v448
        %v451 = vadd.f32 %v435, %v449
        %v452 = vadd.f32 %v436, %v450
        %453 = vset.pattern.permute.xlu0 5
        %454 = vperm.xlu0 %453, %v357
        %v455 = vpop.permute.xlu0 %454
        %457 = vset.pattern.permute.xlu0 5
        %458 = vperm.xlu0 %457, %v358
        %v459 = vpop.permute.xlu0 %458
        %v461 = vlaneseq
        %v462 = vshrl.u32 %v461, 7
        %v463 = vsub.s32 5, %v462
        %v464 = vrot.slane %v355, %v463
        %v465 = vmul.f32 %v455, %v464
        %v466 = vmul.f32 %v459, %v464
        %v467 = vadd.f32 %v451, %v465
        %v468 = vadd.f32 %v452, %v466
        %469 = vset.pattern.permute.xlu0 6
        %470 = vperm.xlu0 %469, %v357
        %v471 = vpop.permute.xlu0 %470
        %473 = vset.pattern.permute.xlu0 6
        %474 = vperm.xlu0 %473, %v358
        %v475 = vpop.permute.xlu0 %474
        %v477 = vlaneseq
        %v478 = vshrl.u32 %v477, 7
        %v479 = vsub.s32 6, %v478
        %v480 = vrot.slane %v355, %v479
        %v481 = vmul.f32 %v471, %v480
        %v482 = vmul.f32 %v475, %v480
        %v483 = vadd.f32 %v467, %v481
        %v484 = vadd.f32 %v468, %v482
        %485 = vset.pattern.permute.xlu0 7
        %486 = vperm.xlu0 %485, %v357
        %v487 = vpop.permute.xlu0 %486
        %489 = vset.pattern.permute.xlu0 7
        %490 = vperm.xlu0 %489, %v358
        %v491 = vpop.permute.xlu0 %490
        %v493 = vlaneseq
        %v494 = vshrl.u32 %v493, 7
        %v495 = vsub.s32 7, %v494
        %v496 = vrot.slane %v355, %v495
        %v497 = vmul.f32 %v487, %v496
        %v498 = vmul.f32 %v491, %v496
        %v499 = vadd.f32 %v483, %v497
        %v500 = vadd.f32 %v484, %v498
        %501 = vset.pattern.permute.xlu0 8
        %502 = vperm.xlu0 %501, %v357
        %v503 = vpop.permute.xlu0 %502
        %505 = vset.pattern.permute.xlu0 8
        %506 = vperm.xlu0 %505, %v358
        %v507 = vpop.permute.xlu0 %506
        %v509 = vlaneseq
        %v510 = vshrl.u32 %v509, 7
        %v511 = vsub.s32 0, %v510
        %v512 = vrot.slane %v356, %v511
        %v513 = vmul.f32 %v503, %v512
        %v514 = vmul.f32 %v507, %v512
        %v515 = vadd.f32 %v499, %v513
        %v516 = vadd.f32 %v500, %v514
        %517 = vset.pattern.permute.xlu0 9
        %518 = vperm.xlu0 %517, %v357
        %v519 = vpop.permute.xlu0 %518
        %521 = vset.pattern.permute.xlu0 9
        %522 = vperm.xlu0 %521, %v358
        %v523 = vpop.permute.xlu0 %522
        %v525 = vlaneseq
        %v526 = vshrl.u32 %v525, 7
        %v527 = vsub.s32 1, %v526
        %v528 = vrot.slane %v356, %v527
        %v529 = vmul.f32 %v519, %v528
        %v530 = vmul.f32 %v523, %v528
        %v531 = vadd.f32 %v515, %v529
        %v532 = vadd.f32 %v516, %v530
        %533 = vset.pattern.permute.xlu0 10
        %534 = vperm.xlu0 %533, %v357
        %v535 = vpop.permute.xlu0 %534
        %537 = vset.pattern.permute.xlu0 10
        %538 = vperm.xlu0 %537, %v358
        %v539 = vpop.permute.xlu0 %538
        %v541 = vlaneseq
        %v542 = vshrl.u32 %v541, 7
        %v543 = vsub.s32 2, %v542
        %v544 = vrot.slane %v356, %v543
        %v545 = vmul.f32 %v535, %v544
        %v546 = vmul.f32 %v539, %v544
        %v547 = vadd.f32 %v531, %v545
        %v548 = vadd.f32 %v532, %v546
        %549 = vset.pattern.permute.xlu0 11
        %550 = vperm.xlu0 %549, %v357
        %v551 = vpop.permute.xlu0 %550
        %553 = vset.pattern.permute.xlu0 11
        %554 = vperm.xlu0 %553, %v358
        %v555 = vpop.permute.xlu0 %554
        %v557 = vlaneseq
        %v558 = vshrl.u32 %v557, 7
        %v559 = vsub.s32 3, %v558
        %v560 = vrot.slane %v356, %v559
        %v561 = vmul.f32 %v551, %v560
        %v562 = vmul.f32 %v555, %v560
        %v563 = vadd.f32 %v547, %v561
        %v564 = vadd.f32 %v548, %v562
        %565 = vset.pattern.permute.xlu0 12
        %566 = vperm.xlu0 %565, %v357
        %v567 = vpop.permute.xlu0 %566
        %569 = vset.pattern.permute.xlu0 12
        %570 = vperm.xlu0 %569, %v358
        %v571 = vpop.permute.xlu0 %570
        %v573 = vlaneseq
        %v574 = vshrl.u32 %v573, 7
        %v575 = vsub.s32 4, %v574
        %v576 = vrot.slane %v356, %v575
        %v577 = vmul.f32 %v567, %v576
        %v578 = vmul.f32 %v571, %v576
        %v579 = vadd.f32 %v563, %v577
        %v580 = vadd.f32 %v564, %v578
        %581 = vset.pattern.permute.xlu0 13
        %582 = vperm.xlu0 %581, %v357
        %v583 = vpop.permute.xlu0 %582
        %585 = vset.pattern.permute.xlu0 13
        %586 = vperm.xlu0 %585, %v358
        %v587 = vpop.permute.xlu0 %586
        %v589 = vlaneseq
        %v590 = vshrl.u32 %v589, 7
        %v591 = vsub.s32 5, %v590
        %v592 = vrot.slane %v356, %v591
        %v593 = vmul.f32 %v583, %v592
        %v594 = vmul.f32 %v587, %v592
        %v595 = vadd.f32 %v579, %v593
        %v596 = vadd.f32 %v580, %v594
        %597 = vset.pattern.permute.xlu0 14
        %598 = vperm.xlu0 %597, %v357
        %v599 = vpop.permute.xlu0 %598
        %601 = vset.pattern.permute.xlu0 14
        %602 = vperm.xlu0 %601, %v358
        %v603 = vpop.permute.xlu0 %602
        %v605 = vlaneseq
        %v606 = vshrl.u32 %v605, 7
        %v607 = vsub.s32 6, %v606
        %v608 = vrot.slane %v356, %v607
        %v609 = vmul.f32 %v599, %v608
        %v610 = vmul.f32 %v603, %v608
        %v611 = vadd.f32 %v595, %v609
        %v612 = vadd.f32 %v596, %v610
        %613 = vset.pattern.permute.xlu0 15
        %614 = vperm.xlu0 %613, %v357
        %v615 = vpop.permute.xlu0 %614
        %617 = vset.pattern.permute.xlu0 15
        %618 = vperm.xlu0 %617, %v358
        %v619 = vpop.permute.xlu0 %618
        %v621 = vlaneseq
        %v622 = vshrl.u32 %v621, 7
        %v623 = vsub.s32 7, %v622
        %v624 = vrot.slane %v356, %v623
        %v625 = vmul.f32 %v615, %v624
        %v626 = vmul.f32 %v619, %v624
        %v627 = vadd.f32 %v611, %v625
        %v628 = vadd.f32 %v612, %v626
        %v629 = vmax.f32 %v627, 0.0
        %v630 = vmax.f32 %v628, 0.0
        %v631 = vld [vmem:[%s5] sm:$0x7]
        %v632 = vld [vmem:[%s6] sm:$0x7]
        %634 = vset.pattern.permute.xlu0 0
        %635 = vperm.xlu0 %634, %v631
        %v636 = vpop.permute.xlu0 %635
        %v638 = vlaneseq
        %v639 = vshrl.u32 %v638, 7
        %v640 = vsub.s32 0, %v639
        %v641 = vrot.slane %v629, %v640
        %v642 = vmul.f32 %v636, %v641
        %644 = vset.pattern.permute.xlu0 0
        %645 = vperm.xlu0 %644, %v632
        %v646 = vpop.permute.xlu0 %645
        %v648 = vadd.f32 %v642, %v646
        %649 = vset.pattern.permute.xlu0 1
        %650 = vperm.xlu0 %649, %v631
        %v651 = vpop.permute.xlu0 %650
        %v653 = vlaneseq
        %v654 = vshrl.u32 %v653, 7
        %v655 = vsub.s32 1, %v654
        %v656 = vrot.slane %v629, %v655
        %v657 = vmul.f32 %v651, %v656
        %v658 = vadd.f32 %v648, %v657
        %659 = vset.pattern.permute.xlu0 2
        %660 = vperm.xlu0 %659, %v631
        %v661 = vpop.permute.xlu0 %660
        %v663 = vlaneseq
        %v664 = vshrl.u32 %v663, 7
        %v665 = vsub.s32 2, %v664
        %v666 = vrot.slane %v629, %v665
        %v667 = vmul.f32 %v661, %v666
        %v668 = vadd.f32 %v658, %v667
        %669 = vset.pattern.permute.xlu0 3
        %670 = vperm.xlu0 %669, %v631
        %v671 = vpop.permute.xlu0 %670
        %v673 = vlaneseq
        %v674 = vshrl.u32 %v673, 7
        %v675 = vsub.s32 3, %v674
        %v676 = vrot.slane %v629, %v675
        %v677 = vmul.f32 %v671, %v676
        %v678 = vadd.f32 %v668, %v677
        %679 = vset.pattern.permute.xlu0 4
        %680 = vperm.xlu0 %679, %v631
        %v681 = vpop.permute.xlu0 %680
        %v683 = vlaneseq
        %v684 = vshrl.u32 %v683, 7
        %v685 = vsub.s32 4, %v684
        %v686 = vrot.slane %v629, %v685
        %v687 = vmul.f32 %v681, %v686
        %v688 = vadd.f32 %v678, %v687
        %689 = vset.pattern.permute.xlu0 5
        %690 = vperm.xlu0 %689, %v631
        %v691 = vpop.permute.xlu0 %690
        %v693 = vlaneseq
        %v694 = vshrl.u32 %v693, 7
        %v695 = vsub.s32 5, %v694
        %v696 = vrot.slane %v629, %v695
        %v697 = vmul.f32 %v691, %v696
        %v698 = vadd.f32 %v688, %v697
        %699 = vset.pattern.permute.xlu0 6
        %700 = vperm.xlu0 %699, %v631
        %v701 = vpop.permute.xlu0 %700
        %v703 = vlaneseq
        %v704 = vshrl.u32 %v703, 7
        %v705 = vsub.s32 6, %v704
        %v706 = vrot.slane %v629, %v705
        %v707 = vmul.f32 %v701, %v706
        %v708 = vadd.f32 %v698, %v707
        %709 = vset.pattern.permute.xlu0 7
        %710 = vperm.xlu0 %709, %v631
        %v711 = vpop.permute.xlu0 %710
        %v713 = vlaneseq
        %v714 = vshrl.u32 %v713, 7
        %v715 = vsub.s32 7, %v714
        %v716 = vrot.slane %v629, %v715
        %v717 = vmul.f32 %v711, %v716
        %v718 = vadd.f32 %v708, %v717
        %719 = vset.pattern.permute.xlu0 8
        %720 = vperm.xlu0 %719, %v631
        %v721 = vpop.permute.xlu0 %720
        %v723 = vlaneseq
        %v724 = vshrl.u32 %v723, 7
        %v725 = vsub.s32 0, %v724
        %v726 = vrot.slane %v630, %v725
        %v727 = vmul.f32 %v721, %v726
        %v728 = vadd.f32 %v718, %v727
        %729 = vset.pattern.permute.xlu0 9
        %730 = vperm.xlu0 %729, %v631
        %v731 = vpop.permute.xlu0 %730
        %v733 = vlaneseq
        %v734 = vshrl.u32 %v733, 7
        %v735 = vsub.s32 1, %v734
        %v736 = vrot.slane %v630, %v735
        %v737 = vmul.f32 %v731, %v736
        %v738 = vadd.f32 %v728, %v737
        %739 = vset.pattern.permute.xlu0 10
        %740 = vperm.xlu0 %739, %v631
        %v741 = vpop.permute.xlu0 %740
        %v743 = vlaneseq
        %v744 = vshrl.u32 %v743, 7
        %v745 = vsub.s32 2, %v744
        %v746 = vrot.slane %v630, %v745
        %v747 = vmul.f32 %v741, %v746
        %v748 = vadd.f32 %v738, %v747
        %749 = vset.pattern.permute.xlu0 11
        %750 = vperm.xlu0 %749, %v631
        %v751 = vpop.permute.xlu0 %750
        %v753 = vlaneseq
        %v754 = vshrl.u32 %v753, 7
        %v755 = vsub.s32 3, %v754
        %v756 = vrot.slane %v630, %v755
        %v757 = vmul.f32 %v751, %v756
        %v758 = vadd.f32 %v748, %v757
        %759 = vst [vmem:[%s269] sm:$0x7] %v758
        %s760 = sand.u32 %s181, 1
        %s761 = scalar_lea.sflag [#allocation3], %s760
        %s762 = sand.u32 %s181, 1
        %s763 = smul.addr %s762, 4
        %s764 = scalar_lea.vmem [#allocation2], %s763
        // Predicated region
        $region49: #{tpu_custom_call.1} parent=47 // pred_check
          %p765 = pneg %p191
        $region50: #{tpu_custom_call.1} parent=47 // pred_check_branch
          %767 = sbr.rel (%p765) target = $region52
        $region51: #{tpu_custom_call.1} parent=47 // pred_region
          %s769 = ssub.s32 64, 64
          %770 = vsyncadd %s761, %s769
          %s771 = smul.addr %s21, 64
          %s772 = scalar_lea.hbm %s7, %s771
          %s774 = sshll.u32 %s764, 4
          %s775 = int_to_ptr.vmem [resolvable:$true] %s774
          %777 = dma.vmem_to_hbm [thread:$0]  %s775, 64, %s772, %s761
        $region52: #{tpu_custom_call.1} parent=47 // pred_fallthru
          _
      $region48: #{tpu_custom_call.1} parent=5 // pred_fallthru
        _
      %p778 = scmp.le.s32.totalorder 2, %s16
      // Predicated region
      $region53: #{tpu_custom_call.1} parent=5 // pred_check
        %p779 = pneg %p778
      $region54: #{tpu_custom_call.1} parent=5 // pred_check_branch
        %781 = sbr.rel (%p779) target = $region56
      $region55: #{tpu_custom_call.1} parent=5 // pred_region
        %s782 = ssub.s32 %s16, 2
        // Predicated region
        $region57: #{tpu_custom_call.1} parent=55 // pred_check
          %p783 = pneg %p197
        $region58: #{tpu_custom_call.1} parent=55 // pred_check_branch
          %785 = sbr.rel (%p783) target = $region60
        $region59: #{tpu_custom_call.1} parent=55 // pred_region
          %s786 = sand.u32 %s182, 1
          %s787 = scalar_lea.sflag [#allocation3], %s786
          %s788 = sand.u32 %s182, 1
          %s789 = smul.addr %s788, 4
          %s790 = scalar_lea.vmem [#allocation2], %s789
          %791 = dma.done %s787, 64
        $region60: #{tpu_custom_call.1} parent=55 // pred_fallthru
          _
      $region56: #{tpu_custom_call.1} parent=5 // pred_fallthru
        _
    $region6: #{tpu_custom_call.1} parent=1 // loop_footer
      %s20 = sadd.s32 1, %s16
    $region7: #{tpu_custom_call.1} parent=1 // loop_footer_branch
      %15 = sbr.rel target = $region3
    $region8: #{tpu_custom_call.1} parent=1 // loop_exit
      _
    %792 = vsyncpa [#allocation3], 1
    %s793 = scalar_lea.sflag [#allocation3], 1
    %794 = vsyncpa %s793, 1

</llo_original>
